<compile_context>
chip_gen: v6e
topology: v6e:2x2x1
jax: 0.10.0
libtpu: 0.0.40
codegen_flags: <defaults>
</compile_context>

<pallas_src>
import math

import jax
import jax.numpy as jnp
from jax.experimental import pallas as pl
from jax.experimental.pallas import tpu as pltpu

_LANE = 128
_SUBLANE = 8


def _round_up(x, m):
    return (x + m - 1) // m * m


def _fan_kernel(x_ref, w_ref, bsin_ref, bcos_ref, bg_ref, out_ref):
    """One (TM, Din) row tile of the fused FAN-phase-offset layer.

    x_ref   : (TM, Din)        streamed per grid step
    w_ref   : (Din, Pp + Gp)   resident fused weights [Wp | Wg], zero padded
    bsin_ref: (1, Pp)  f32     bp + offset            (zero padded)
    bcos_ref: (1, Pp)  f32     bp + pi/2 - offset     (zero padded)
    bg_ref  : (1, Gp)  f32     bg                     (zero padded)
    out_ref : (TM, 2*Pp + Gp)  [ sin(p+off) | cos(p+pi/2-off) | gelu(g) ]
    """
    pp = bsin_ref.shape[-1]

    # single fused matmul, f32 accumulation on the MXU
    y = jnp.dot(x_ref[...], w_ref[...], preferred_element_type=jnp.float32)

    p = y[:, :pp]
    g = y[:, pp:] + bg_ref[...]
    # exact (erf-based) GELU, matching torch.nn.GELU() default
    g = 0.5 * g * (1.0 + jax.lax.erf(g * jnp.float32(1.0 / math.sqrt(2.0))))

    # lane-aligned slab stores (pp and gp are multiples of 128)
    out_ref[:, :pp] = jnp.sin(p + bsin_ref[...]).astype(out_ref.dtype)
    out_ref[:, pp:2 * pp] = jnp.cos(p + bcos_ref[...]).astype(out_ref.dtype)
    out_ref[:, 2 * pp:] = g.astype(out_ref.dtype)


def fan_layer_phase_offset_forward(x, wp, bp, wg, bg, offset_unconstrained,
                                   *, limit_phase_offset=False,
                                   max_phase=math.pi, block_m=512):
    """x: (..., Din).  wp: (Din, Pdim), wg: (Din, Gdim) (pre-transposed vs torch),
    bp: (Pdim,), bg: (Gdim,), offset_unconstrained: (Pdim,).
    Returns (..., 2*Pdim + Gdim) = (..., output_dim) when output_dim % 4 == 0."""
    din = x.shape[-1]
    pdim = wp.shape[-1]
    gdim = wg.shape[-1]
    out_dim = 2 * pdim + gdim

    lead = x.shape[:-1]
    m = int(math.prod(lead)) if lead else 1

    # Tiny phase-offset vector: resolve it in the wrapper and fold into biases.
    if limit_phase_offset:
        offset = max_phase * jnp.tanh(offset_unconstrained.astype(jnp.float32))
    else:
        offset = offset_unconstrained.astype(jnp.float32)
    bp32 = bp.astype(jnp.float32)
    bias_sin = bp32 + offset                      # sin(p + offset)
    bias_cos = bp32 + (math.pi / 2.0) - offset    # cos(p + pi/2 - offset)

    # Pad feature widths to lane multiples -> lane-dense output slabs + fused N.
    pp = _round_up(pdim, _LANE)
    gp = _round_up(gdim, _LANE)

    compute_dtype = x.dtype
    w_fused = jnp.zeros((din, pp + gp), compute_dtype)
    w_fused = w_fused.at[:, :pdim].set(wp.astype(compute_dtype))
    w_fused = w_fused.at[:, pp:pp + gdim].set(wg.astype(compute_dtype))

    bsin = jnp.zeros((1, pp), jnp.float32).at[0, :pdim].set(bias_sin)
    bcos = jnp.zeros((1, pp), jnp.float32).at[0, :pdim].set(bias_cos)
    bg2 = jnp.zeros((1, gp), jnp.float32).at[0, :gdim].set(bg.astype(jnp.float32))

    # Row tiling: pad M so every block is full; single block for small M.
    x2 = x.reshape(m, din)
    if m <= block_m:
        tm = _round_up(m, _SUBLANE)
        m_pad = tm
    else:
        tm = block_m
        m_pad = _round_up(m, tm)
    if m_pad != m:
        x2 = jnp.pad(x2, ((0, m_pad - m), (0, 0)))

    out_w = 2 * pp + gp
    grid = (m_pad // tm,)

    itemsize = jnp.dtype(compute_dtype).itemsize
    cost = pl.CostEstimate(
        flops=2 * m_pad * din * (pp + gp),
        transcendentals=m_pad * (2 * pp + gp),          # sin + cos + erf
        bytes_accessed=(m_pad * din * itemsize          # x
                        + din * (pp + gp) * itemsize    # fused weights
                        + 4 * (2 * pp + gp)             # f32 biases
                        + m_pad * out_w * itemsize))    # output

    out = pl.pallas_call(
        _fan_kernel,
        out_shape=jax.ShapeDtypeStruct((m_pad, out_w), compute_dtype),
        grid=grid,
        in_specs=[
            pl.BlockSpec((tm, din), lambda i: (i, 0)),        # streamed row tile
            pl.BlockSpec((din, pp + gp), lambda i: (0, 0)),   # resident weights
            pl.BlockSpec((1, pp), lambda i: (0, 0)),          # resident biases
            pl.BlockSpec((1, pp), lambda i: (0, 0)),
            pl.BlockSpec((1, gp), lambda i: (0, 0)),
        ],
        out_specs=pl.BlockSpec((tm, out_w), lambda i: (i, 0)),
        compiler_params=pltpu.CompilerParams(
            dimension_semantics=("parallel",),        # megacore row-sharding (v7x)
            vmem_limit_bytes=64 * 1024 * 1024),
        cost_estimate=cost,
    )(x2, w_fused, bsin, bcos, bg2)

    # Strip row/lane padding.  If pdim/gdim are already lane multiples this is a
    # plain row slice (no re-concatenation needed).
    if pp == pdim and gp == gdim:
        result = out[:m]
    else:
        result = jnp.concatenate(
            [out[:m, :pdim],
             out[:m, pp:pp + pdim],
             out[:m, 2 * pp:2 * pp + gdim]], axis=-1)
    return result.reshape(*lead, out_dim)


def fan_layer_ref(x, wp, bp, wg, bg, offset_unconstrained,
                  limit_phase_offset=False, max_phase=math.pi):
    """Pure-JAX reference matching the PyTorch forward."""
    p = x @ wp + bp
    g = x @ wg + bg
    g = 0.5 * g * (1.0 + jax.lax.erf(g * (1.0 / math.sqrt(2.0))))
    if limit_phase_offset:
        offset = max_phase * jnp.tanh(offset_unconstrained)
    else:
        offset = offset_unconstrained
    sin_part = jnp.sin(p + offset)
    cos_part = jnp.cos(p + math.pi / 2.0 - offset)
    return jnp.concatenate([sin_part, cos_part, g], axis=-1)


if __name__ == "__main__":
    key = jax.random.PRNGKey(0)
    k_x, k_wp, k_bp, k_wg, k_bg, k_off = jax.random.split(key, 6)

    # NOTE: output width = 2*(output_dim//4) + output_dim//2, which equals
    # output_dim only when output_dim % 4 == 0 (mirrors the PyTorch module).
    batch, seq, input_dim, output_dim = 2, 8, 16, 32
    p_dim = output_dim // 4   # 8
    g_dim = output_dim // 2   # 16

    bound = 1.0 / math.sqrt(input_dim)
    x = jax.random.normal(k_x, (batch, seq, input_dim), jnp.float32)
    # weights stored as (in, out), i.e. transposed relative to torch's (out, in)
    wp = jax.random.uniform(k_wp, (input_dim, p_dim), jnp.float32, -bound, bound)
    bp = jax.random.uniform(k_bp, (p_dim,), jnp.float32, -bound, bound)
    wg = jax.random.uniform(k_wg, (input_dim, g_dim), jnp.float32, -bound, bound)
    bg = jax.random.uniform(k_bg, (g_dim,), jnp.float32, -bound, bound)
    # module initializes the offset to zeros; use nonzero values to exercise it
    offset_u = 0.1 * jax.random.normal(k_off, (p_dim,), jnp.float32)

    for limit in (False, True):
        out = fan_layer_phase_offset_forward(
            x, wp, bp, wg, bg, offset_u,
            limit_phase_offset=limit, max_phase=math.pi)
        out = jax.block_until_ready(out)
        ref = fan_layer_ref(x, wp, bp, wg, bg, offset_u,
                            limit_phase_offset=limit, max_phase=math.pi)
        assert out.shape == (batch, seq, output_dim), out.shape
        err = float(jnp.max(jnp.abs(out - ref)))
        assert err < 1e-5, err

    print("KERNEL_OK")
</pallas_src>

<mosaic_0001>
module attributes {stable_mosaic.version = 11 : i64} {
  func.func @_fan_kernel(%arg0: i32, %arg1: memref<16x16xf32, #tpu.memory_space<vmem>>, %arg2: memref<16x256xf32, #tpu.memory_space<vmem>>, %arg3: memref<1x128xf32, #tpu.memory_space<vmem>>, %arg4: memref<1x128xf32, #tpu.memory_space<vmem>>, %arg5: memref<1x128xf32, #tpu.memory_space<vmem>>, %arg6: memref<16x384xf32, #tpu.memory_space<vmem>>) attributes {dimension_semantics = [#tpu.dimension_semantics<parallel>], iteration_bounds = array<i64: 1>, scalar_prefetch = 0 : i64, scratch_operands = 0 : i64, tpu.core_type = #tpu.core_type<tc>, window_params = [{transform_indices = @transform_0, window_bounds = array<i64: 16, 16>}, {pipeline_mode = #tpu.pipeline_mode<synchronous>, transform_indices = @transform_1, window_bounds = array<i64: 16, 256>}, {pipeline_mode = #tpu.pipeline_mode<synchronous>, transform_indices = @transform_2, window_bounds = array<i64: 1, 128>}, {pipeline_mode = #tpu.pipeline_mode<synchronous>, transform_indices = @transform_3, window_bounds = array<i64: 1, 128>}, {pipeline_mode = #tpu.pipeline_mode<synchronous>, transform_indices = @transform_4, window_bounds = array<i64: 1, 128>}, {transform_indices = @transform_5, window_bounds = array<i64: 16, 384>}]} {
    %c0 = arith.constant 0 : index
    %c0_0 = arith.constant 0 : index
    %0 = vector.load %arg1[%c0, %c0_0] : memref<16x16xf32, #tpu.memory_space<vmem>>, vector<16x16xf32>
    %c0_1 = arith.constant 0 : index
    %c0_2 = arith.constant 0 : index
    %1 = vector.load %arg2[%c0_1, %c0_2] : memref<16x256xf32, #tpu.memory_space<vmem>>, vector<16x256xf32>
    %cst = arith.constant dense<0.000000e+00> : vector<16x256xf32>
    %2 = tpu.matmul %0, %1, %cst {dimension_numbers = #tpu.dot_dimension_numbers<[1], [0], [0], [1], [0, 0, 1, 1], [], []>} : vector<16x16xf32>, vector<16x256xf32>, vector<16x256xf32> -> vector<16x256xf32>
    %3 = vector.extract_strided_slice %2 {offsets = [0, 0], sizes = [16, 128], strides = [1, 1]} : vector<16x256xf32> to vector<16x128xf32>
    %4 = vector.extract_strided_slice %2 {offsets = [0, 128], sizes = [16, 128], strides = [1, 1]} : vector<16x256xf32> to vector<16x128xf32>
    %c0_3 = arith.constant 0 : index
    %c0_4 = arith.constant 0 : index
    %5 = vector.load %arg5[%c0_3, %c0_4] : memref<1x128xf32, #tpu.memory_space<vmem>>, vector<1x128xf32>
    %6 = vector.broadcast %5 : vector<1x128xf32> to vector<16x128xf32>
    %7 = arith.addf %4, %6 : vector<16x128xf32>
    %cst_5 = arith.constant 5.000000e-01 : f32
    %8 = vector.broadcast %cst_5 : f32 to vector<16x128xf32>
    %9 = arith.mulf %8, %7 : vector<16x128xf32>
    %cst_6 = arith.constant 0.707106769 : f32
    %10 = vector.broadcast %cst_6 : f32 to vector<16x128xf32>
    %11 = arith.mulf %7, %10 : vector<16x128xf32>
    %12 = math.erf %11 : vector<16x128xf32>
    %cst_7 = arith.constant 1.000000e+00 : f32
    %13 = vector.broadcast %cst_7 : f32 to vector<16x128xf32>
    %14 = arith.addf %13, %12 : vector<16x128xf32>
    %15 = arith.mulf %9, %14 : vector<16x128xf32>
    %c0_8 = arith.constant 0 : index
    %c0_9 = arith.constant 0 : index
    %16 = vector.load %arg3[%c0_8, %c0_9] : memref<1x128xf32, #tpu.memory_space<vmem>>, vector<1x128xf32>
    %17 = vector.broadcast %16 : vector<1x128xf32> to vector<16x128xf32>
    %18 = arith.addf %3, %17 : vector<16x128xf32>
    %19 = math.sin %18 : vector<16x128xf32>
    %c0_10 = arith.constant 0 : index
    %c0_11 = arith.constant 0 : index
    %20 = vector.load %arg6[%c0_10, %c0_11] : memref<16x384xf32, #tpu.memory_space<vmem>>, vector<16x128xf32>
    tpu.vector_store %arg6[%c0_10, %c0_11], %19 {strides = array<i32>} : memref<16x384xf32, #tpu.memory_space<vmem>>, vector<16x128xf32>,
    %c0_12 = arith.constant 0 : index
    %c0_13 = arith.constant 0 : index
    %21 = vector.load %arg4[%c0_12, %c0_13] : memref<1x128xf32, #tpu.memory_space<vmem>>, vector<1x128xf32>
    %22 = vector.broadcast %21 : vector<1x128xf32> to vector<16x128xf32>
    %23 = arith.addf %3, %22 : vector<16x128xf32>
    %24 = math.cos %23 : vector<16x128xf32>
    %c0_14 = arith.constant 0 : index
    %c128 = arith.constant 128 : index
    %25 = vector.load %arg6[%c0_14, %c128] : memref<16x384xf32, #tpu.memory_space<vmem>>, vector<16x128xf32>
    tpu.vector_store %arg6[%c0_14, %c128], %24 {strides = array<i32>} : memref<16x384xf32, #tpu.memory_space<vmem>>, vector<16x128xf32>,
    %c0_15 = arith.constant 0 : index
    %c256 = arith.constant 256 : index
    %26 = vector.load %arg6[%c0_15, %c256] : memref<16x384xf32, #tpu.memory_space<vmem>>, vector<16x128xf32>
    tpu.vector_store %arg6[%c0_15, %c256], %15 {strides = array<i32>} : memref<16x384xf32, #tpu.memory_space<vmem>>, vector<16x128xf32>,
    return
  }
  func.func @transform_0(%arg0: i32) -> (i32, i32) {
    %c0_i32 = arith.constant 0 : i32
    %c0_i32_0 = arith.constant 0 : i32
    return %arg0, %c0_i32 : i32, i32
  }
  func.func @transform_1(%arg0: i32) -> (i32, i32) {
    %c0_i32 = arith.constant 0 : i32
    %c0_i32_0 = arith.constant 0 : i32
    %c0_i32_1 = arith.constant 0 : i32
    return %c0_i32, %c0_i32_0 : i32, i32
  }
  func.func @transform_2(%arg0: i32) -> (i32, i32) {
    %c0_i32 = arith.constant 0 : i32
    %c0_i32_0 = arith.constant 0 : i32
    %c0_i32_1 = arith.constant 0 : i32
    return %c0_i32, %c0_i32_0 : i32, i32
  }
  func.func @transform_3(%arg0: i32) -> (i32, i32) {
    %c0_i32 = arith.constant 0 : i32
    %c0_i32_0 = arith.constant 0 : i32
    %c0_i32_1 = arith.constant 0 : i32
    return %c0_i32, %c0_i32_0 : i32, i32
  }
  func.func @transform_4(%arg0: i32) -> (i32, i32) {
    %c0_i32 = arith.constant 0 : i32
    %c0_i32_0 = arith.constant 0 : i32
    %c0_i32_1 = arith.constant 0 : i32
    return %c0_i32, %c0_i32_0 : i32, i32
  }
  func.func @transform_5(%arg0: i32) -> (i32, i32) {
    %c0_i32 = arith.constant 0 : i32
    %c0_i32_0 = arith.constant 0 : i32
    return %arg0, %c0_i32 : i32, i32
  }
}

</mosaic_0001>

<llo_original>
// kernel: tpu_custom_call.1
$region0: #{tpu_custom_call.1}
  #allocation0 [shape = 'u32[]', space=smem, size = 0x4, offset = 0x4, fixed_abs, tag = 'smem constant byte address 0x4 - core index']
  #allocation1 [shape = 'u32[144,128]{1,0:T(1,128)}', space=vmem, size = 0x12000, scoped, tag = 'internal scratch']
  %s0 = inlined_call_operand.hbm [shape: f32[16,16], index: 0, kind: input, shape index: {}]
  %s1 = inlined_call_operand.hbm [shape: f32[16,256], index: 1, kind: input, shape index: {}]
  %s2 = inlined_call_operand.vmem [shape: f32[1,128], index: 2, kind: input, shape index: {}]
  %s3 = inlined_call_operand.vmem [shape: f32[1,128], index: 3, kind: input, shape index: {}]
  %s4 = inlined_call_operand.vmem [shape: f32[1,128], index: 4, kind: input, shape index: {}]
  %s5 = inlined_call_operand.hbm [shape: f32[16,384], index: 5, kind: output, shape index: {}]
  %s6 = sld [smem:[#allocation0]]
  $region38: #{tpu_custom_call.1} parent=0
    _
  %s8 = ssub.s32 1, %s6
  %s9 = scalar_select 0, %s8, %s6
  $region1: #{tpu_custom_call.1} parent=0
    #allocation2 [shape = 'u8[8192]{0}', space=vmem, size = 0x2000, scoped, tag = 'input window, operand 0, single buffered']
    #allocation3 [shape = 's32[1]{0}', space=sflag, size = 0x4, scoped, tag = 'scoped memory for tpu_custom_call.1']
    #allocation4 [shape = 's32[1]{0}', space=sflag, size = 0x4, scoped, tag = 'scoped memory for tpu_custom_call.1']
    #allocation5 [shape = 'u8[16384]{0}', space=vmem, size = 0x4000, scoped, tag = 'input window, operand 1, single buffered']
    #allocation6 [shape = 's32[1]{0}', space=sflag, size = 0x4, scoped, tag = 'scoped memory for tpu_custom_call.1']
    #allocation7 [shape = 'u8[24576]{0}', space=vmem, size = 0x6000, scoped, tag = 'output window, operand 0, single buffered']
    %10 = vsyncpa [#allocation3], 0
    %11 = vsyncpa [#allocation6], 0
    %12 = vsyncpa [#allocation4], 0
    // Predicated region
    $region2: #{tpu_custom_call.1} parent=1 // pred_check
      _
    $region3: #{tpu_custom_call.1} parent=1 // pred_check_branch
      %14 = sbr.rel (0) target = $region5
    $region4: #{tpu_custom_call.1} parent=1 // pred_region
      %s16 = ssub.s32 256, 256
      %17 = vsyncadd [#allocation3], %s16
      %s18 = sshll.u32 [#allocation2], 4
      %s19 = int_to_ptr.vmem [resolvable:$true] %s18
      %24 = dma.hbm_to_vmem [thread:$0]  %s0, 256, %s19, [#allocation3], 128, 128, 8
    $region5: #{tpu_custom_call.1} parent=1 // pred_fallthru
      _
    // Predicated region
    $region6: #{tpu_custom_call.1} parent=1 // pred_check
      _
    $region7: #{tpu_custom_call.1} parent=1 // pred_check_branch
      %26 = sbr.rel (0) target = $region9
    $region8: #{tpu_custom_call.1} parent=1 // pred_region
      %s28 = ssub.s32 512, 512
      %29 = vsyncadd [#allocation6], %s28
      %s30 = sshll.u32 [#allocation5], 4
      %s31 = int_to_ptr.vmem [resolvable:$true] %s30
      %36 = dma.hbm_to_vmem [thread:$0]  %s1, 512, %s31, [#allocation6], 256, 256, 16
    $region9: #{tpu_custom_call.1} parent=1 // pred_fallthru
      _
    // Predicated region
    $region10: #{tpu_custom_call.1} parent=1 // pred_check
      _
    $region11: #{tpu_custom_call.1} parent=1 // pred_check_branch
      %38 = sbr.rel (0) target = $region13
    $region12: #{tpu_custom_call.1} parent=1 // pred_region
      _
    $region13: #{tpu_custom_call.1} parent=1 // pred_fallthru
      _
    // Predicated region
    $region14: #{tpu_custom_call.1} parent=1 // pred_check
      _
    $region15: #{tpu_custom_call.1} parent=1 // pred_check_branch
      %40 = sbr.rel (0) target = $region17
    $region16: #{tpu_custom_call.1} parent=1 // pred_region
      _
    $region17: #{tpu_custom_call.1} parent=1 // pred_fallthru
      _
    // Predicated region
    $region18: #{tpu_custom_call.1} parent=1 // pred_check
      _
    $region19: #{tpu_custom_call.1} parent=1 // pred_check_branch
      %42 = sbr.rel (0) target = $region21
    $region20: #{tpu_custom_call.1} parent=1 // pred_region
      _
    $region21: #{tpu_custom_call.1} parent=1 // pred_fallthru
      _
    // Predicated region
    $region22: #{tpu_custom_call.1} parent=1 // pred_check
      _
    $region23: #{tpu_custom_call.1} parent=1 // pred_check_branch
      %44 = sbr.rel (0) target = $region25
    $region24: #{tpu_custom_call.1} parent=1 // pred_region
      %45 = dma.done [#allocation3], 256
    $region25: #{tpu_custom_call.1} parent=1 // pred_fallthru
      _
    // Predicated region
    $region26: #{tpu_custom_call.1} parent=1 // pred_check
      _
    $region27: #{tpu_custom_call.1} parent=1 // pred_check_branch
      %47 = sbr.rel (0) target = $region29
    $region28: #{tpu_custom_call.1} parent=1 // pred_region
      %48 = dma.done [#allocation6], 512
    $region29: #{tpu_custom_call.1} parent=1 // pred_fallthru
      _
    %v49 = vld [vmem:[#allocation2] sm:$0xff]
    %v50 = vld [vmem:[#allocation2 + $0x8] sm:$0xff]
    %v51 = vld [vmem:[#allocation5] sm:$0xff]
    %v52 = vld [vmem:[#allocation5 + $0x8] sm:$0xff]
    %v53 = vld [vmem:[#allocation5 + $0x10] sm:$0xff]
    %v54 = vld [vmem:[#allocation5 + $0x18] sm:$0xff]
    %vm55 = vcmask 130048
    %v57 = vsel %vm55, %v49, 0
    %v60 = vsel %vm55, %v50, 0
    %62 = vmatprep.subr.mxu0 0.0
    %63 = vmatpush1.msra.mxu0 0.0
    %64 = vmatprep.subr.mxu0 0.0
    %65 = vmatpush1.msra.mxu0 0.0
    %66 = vmatprep.subr.mxu0 0.0
    %67 = vmatpush1.msra.mxu0 0.0
    %68 = vmatprep.subr.mxu0 0.0
    %69 = vmatpush1.msra.mxu0 0.0
    %70 = vmatprep.subr.mxu0 0.0
    %71 = vmatpush1.msra.mxu0 0.0
    %72 = vmatprep.subr.mxu0 0.0
    %73 = vmatpush1.msra.mxu0 0.0
    %74 = vmatprep.subr.mxu0 0.0
    %75 = vmatpush1.msra.mxu0 0.0
    %76 = vmatprep.subr.mxu0 0.0
    %77 = vmatpush1.msra.mxu0 0.0
    %78 = vmatprep.subr.mxu0 0.0
    %79 = vmatpush1.msra.mxu0 0.0
    %80 = vmatprep.subr.mxu0 0.0
    %81 = vmatpush1.msra.mxu0 0.0
    %82 = vmatprep.subr.mxu0 0.0
    %83 = vmatpush1.msra.mxu0 0.0
    %84 = vmatprep.subr.mxu0 0.0
    %85 = vmatpush1.msra.mxu0 0.0
    %86 = vmatprep.subr.mxu0 0.0
    %87 = vmatpush1.msra.mxu0 0.0
    %88 = vmatprep.subr.mxu0 0.0
    %89 = vmatpush1.msra.mxu0 0.0
    %90 = vmatprep.subr.mxu0 %v54
    %91 = vmatpush1.msra.mxu0 %v53
    %92 = vmatprep.subr.mxu0 %v52
    %93 = vmatpush1.msra.mxu0 %v51
    %94 = vmatprep.subr.mxu0 0.0
    %95 = vmatpush2.msra.mxu0 0.0
    %96 = vmatprep.subr.mxu0 0.0
    %97 = vmatpush2.msra.mxu0 0.0
    %98 = vmatprep.subr.mxu0 0.0
    %99 = vmatpush2.msra.mxu0 0.0
    %100 = vmatprep.subr.mxu0 0.0
    %101 = vmatpush2.msra.mxu0 0.0
    %102 = vmatprep.subr.mxu0 0.0
    %103 = vmatpush2.msra.mxu0 0.0
    %104 = vmatprep.subr.mxu0 0.0
    %105 = vmatpush2.msra.mxu0 0.0
    %106 = vmatprep.subr.mxu0 0.0
    %107 = vmatpush2.msra.mxu0 0.0
    %108 = vmatprep.subr.mxu0 0.0
    %109 = vmatpush2.msra.mxu0 0.0
    %110 = vmatprep.subr.mxu0 0.0
    %111 = vmatpush2.msra.mxu0 0.0
    %112 = vmatprep.subr.mxu0 0.0
    %113 = vmatpush2.msra.mxu0 0.0
    %114 = vmatprep.subr.mxu0 0.0
    %115 = vmatpush2.msra.mxu0 0.0
    %116 = vmatprep.subr.mxu0 0.0
    %117 = vmatpush2.msra.mxu0 0.0
    %118 = vmatprep.subr.mxu0 0.0
    %119 = vmatpush2.msra.mxu0 0.0
    %120 = vmatprep.subr.mxu0 0.0
    %121 = vmatpush2.msra.mxu0 0.0
    %122 = vmatprep.subr.mxu0 0.0
    %123 = vmatpush2.msra.mxu0 0.0
    %124 = vmatprep.subr.mxu0 0.0
    %125 = vmatpush2.msra.mxu0 0.0
    %126 = vmatprep.mubr.f32.mxu0 0.0
    %127 = vmatmul.mubr.f32.gmra.mxu0 %v57
    %v128 = vpop.f32.mrf.mxu0
    %v129 = vadd.f32 0.0, %v128
    %v130 = vpop.f32.mrf.mxu0
    %v131 = vadd.f32 0.0, %v130
    %132 = vmatprep.mubr.f32.mxu0 0.0
    %133 = vmatmul.mubr.f32.gmra.mxu0 %v60
    %v134 = vpop.f32.mrf.mxu0
    %v135 = vadd.f32 0.0, %v134
    %v136 = vpop.f32.mrf.mxu0
    %v137 = vadd.f32 0.0, %v136
    %138 = vdwg.mxu0
    %v139 = vld [vmem:[%s4] sm:$0x1]
    %v141 = vlaneseq
    %v142 = vshrl.u32 %v141, 7
    %v143 = vsub.s32 0, %v142
    %v144 = vrot.slane %v139, %v143
    %v146 = vadd.f32 %v131, %v144
    %v147 = vadd.f32 %v137, %v144
    %v148 = vmul.f32 %v146, 0.5
    %v149 = vmul.f32 %v147, 0.5
    %v150 = vmul.f32 %v146, 0.70710677
    %v151 = vmul.f32 %v147, 0.70710677
    %v152 = verf.f32.pop %v150
    %v153 = verf.f32.pop %v151
    %v154 = vadd.f32 %v152, 1.0
    %v155 = vadd.f32 %v153, 1.0
    %v156 = vmul.f32 %v148, %v154
    %v157 = vmul.f32 %v149, %v155
    %v158 = vld [vmem:[%s2] sm:$0x1]
    %v160 = vlaneseq
    %v161 = vshrl.u32 %v160, 7
    %v162 = vsub.s32 0, %v161
    %v163 = vrot.slane %v158, %v162
    %v165 = vadd.f32 %v129, %v163
    %v166 = vadd.f32 %v135, %v163
    %v167 = vand.u32 2147483647, %v165
    %vm168 = vcmp.le.f32.partialorder %v167, 0.7853982
    %vm169 = vcmp.lt.s32.totalorder %v165, 0
    %v170 = vand.u32 %v165, 2139095040
    %v171 = vshrl.u32 %v170, 23
    %v172 = vsub.s32 %v171, 127
    %v173 = vand.u32 2147483647, %v165
    %v174 = vand.u32 %v173, 8388607
    %v175 = vor.u32 %v174, 8388608
    %v176 = vsub.s32 0, %v175
    %v177 = vadd.s32 %v172, 1
    %vm178 = vcmp.gt.s32.totalorder %v177, 0
    %v179 = vsel %vm178, %v177, 0
    %v180 = vshrl.u32 %v179, 5
    %v181 = vand.u32 %v179, 31
    %v182 = vsub.s32 32, %v181
    %v183 = vshrl.u32 683565275, %v182
    %v184 = vshll.u32 683565275, %v181
    %v185 = vshrl.u32 2475754826, %v182
    %v186 = vor.u32 %v184, %v185
    %v187 = vshll.u32 2475754826, %v181
    %v188 = vshrl.u32 2131351028, %v182
    %v189 = vor.u32 %v187, %v188
    %v190 = vshll.u32 2131351028, %v181
    %v191 = vshrl.u32 2102212464, %v182
    %v192 = vor.u32 %v190, %v191
    %v193 = vshll.u32 2102212464, %v181
    %v194 = vshrl.u32 920167782, %v182
    %v195 = vor.u32 %v193, %v194
    %v196 = vshll.u32 920167782, %v181
    %v197 = vshrl.u32 1326507024, %v182
    %v198 = vor.u32 %v196, %v197
    %vm199 = vcmp.lt.s32.totalorder %v180, 1
    %vm200 = vcmp.lt.s32.totalorder %v180, 2
    %vm201 = vcmp.lt.s32.totalorder %v180, 3
    %vm202 = vcmp.lt.s32.totalorder %v180, 4
    %v203 = vsel %vm199, %v183, %v186
    %v204 = vsel %vm202, %v192, 2102212464
    %v205 = vsel %vm201, %v189, %v204
    %v206 = vsel %vm200, %v203, %v205
    %v207 = vsel %vm199, %v186, %v189
    %v208 = vsel %vm202, %v195, 920167782
    %v209 = vsel %vm201, %v192, %v208
    %v210 = vsel %vm200, %v207, %v209
    %v211 = vsel %vm199, %v189, %v192
    %v212 = vsel %vm202, %v198, 1326507024
    %v213 = vsel %vm201, %v195, %v212
    %v214 = vsel %vm200, %v211, %v213
    %v215 = vshll.u32 %v175, 8
    %v216 = vmul.u32.u64.compose %v215, %v214
    %v217 = vextract.low.u32 %v216
    %v218 = vextract.high.u32 %v216
    %v219 = vmul.u32.u64.compose %v215, %v210
    %v220 = vextract.low.u32 %v219
    %v221 = vextract.high.u32 %v219
    %v222 = vmul.u32 %v215, %v206
    %v223 = vadd.s32 %v218, %v220
    %vm224 = vc.u32 %v218, %v220
    %v225 = vadd.s32 %v221, 1
    %v226 = vsel %vm224, %v225, %v221
    %v227 = vadd.s32 %v222, %v226
    %v228 = vadd.s32 %v227, 536870912
    %v229 = vshrl.u32 %v228, 30
    %v230 = vshll.u32 %v229, 30
    %v231 = vsub.s32 %v227, %v230
    %vm232 = vcmp.lt.s32.totalorder %v231, 0
    %v233 = vsub.s32 0, %v231
    %v234 = vsel %vm232, %v233, %v231
    %v235 = vclz %v234
    %v236 = vsub.s32 %v235, 2
    %vm237 = vcmp.gt.s32.totalorder 0, %v236
    %v238 = vsel %vm237, 0, %v236
    %v239 = vsub.s32 32, %v238
    %v240 = vshll.u32 %v231, %v238
    %v241 = vshrl.u32 %v223, %v239
    %v242 = vor.u32 %v240, %v241
    %v243 = vsub.s32 4294967266, %v238
    %v244 = vadd.s32 %v243, 127
    %v245 = vshll.u32 %v244, 23
    %v246 = vor.u32 4788187, %v245
    %v247 = vand.u32 2147483647, %v246
    %v249 = vcvt.s32.f32 %v242
    %v250 = vmul.f32 %v249, %v247
    %v251 = vxor.u32 %v250, 2147483648
    %v252 = vsel %vm169, %v251, %v250
    %v253 = vsub.s32 4, %v229
    %v254 = vsel %vm169, %v253, %v229
    %v255 = vsel %vm168, %v165, %v252
    %v256 = vsel %vm168, 0, %v254
    %v257 = vcosq.f32.pop %v255
    %v258 = vsinq.f32.pop %v255
    %vm259 = vweird.f32 %v165
    %v260 = vadd.s32 %v256, 3
    %v261 = vand.u32 %v260, 3
    %vm262 = vcmp.lt.s32.totalorder %v261, 2
    %vm263 = vcmp.eq.s32.totalorder %v261, 0
    %v264 = vxor.u32 %v258, 2147483648
    %v265 = vsel %vm263, %v257, %v264
    %vm266 = vcmp.eq.s32.totalorder %v261, 2
    %v267 = vxor.u32 %v257, 2147483648
    %v268 = vsel %vm266, %v267, %v258
    %v269 = vsel %vm262, %v265, %v268
    %v270 = vsel %vm259, nan, %v269
    %v271 = vand.u32 2147483647, %v166
    %vm272 = vcmp.le.f32.partialorder %v271, 0.7853982
    %vm273 = vcmp.lt.s32.totalorder %v166, 0
    %v274 = vand.u32 %v166, 2139095040
    %v275 = vshrl.u32 %v274, 23
    %v276 = vsub.s32 %v275, 127
    %v277 = vand.u32 2147483647, %v166
    %v278 = vand.u32 %v277, 8388607
    %v279 = vor.u32 %v278, 8388608
    %v280 = vsub.s32 0, %v279
    %v281 = vadd.s32 %v276, 1
    %vm282 = vcmp.gt.s32.totalorder %v281, 0
    %v283 = vsel %vm282, %v281, 0
    %v284 = vshrl.u32 %v283, 5
    %v285 = vand.u32 %v283, 31
    %v286 = vsub.s32 32, %v285
    %v287 = vshrl.u32 683565275, %v286
    %v288 = vshll.u32 683565275, %v285
    %v289 = vshrl.u32 2475754826, %v286
    %v290 = vor.u32 %v288, %v289
    %v291 = vshll.u32 2475754826, %v285
    %v292 = vshrl.u32 2131351028, %v286
    %v293 = vor.u32 %v291, %v292
    %v294 = vshll.u32 2131351028, %v285
    %v295 = vshrl.u32 2102212464, %v286
    %v296 = vor.u32 %v294, %v295
    %v297 = vshll.u32 2102212464, %v285
    %v298 = vshrl.u32 920167782, %v286
    %v299 = vor.u32 %v297, %v298
    %v300 = vshll.u32 920167782, %v285
    %v301 = vshrl.u32 1326507024, %v286
    %v302 = vor.u32 %v300, %v301
    %vm303 = vcmp.lt.s32.totalorder %v284, 1
    %vm304 = vcmp.lt.s32.totalorder %v284, 2
    %vm305 = vcmp.lt.s32.totalorder %v284, 3
    %vm306 = vcmp.lt.s32.totalorder %v284, 4
    %v307 = vsel %vm303, %v287, %v290
    %v308 = vsel %vm306, %v296, 2102212464
    %v309 = vsel %vm305, %v293, %v308
    %v310 = vsel %vm304, %v307, %v309
    %v311 = vsel %vm303, %v290, %v293
    %v312 = vsel %vm306, %v299, 920167782
    %v313 = vsel %vm305, %v296, %v312
    %v314 = vsel %vm304, %v311, %v313
    %v315 = vsel %vm303, %v293, %v296
    %v316 = vsel %vm306, %v302, 1326507024
    %v317 = vsel %vm305, %v299, %v316
    %v318 = vsel %vm304, %v315, %v317
    %v319 = vshll.u32 %v279, 8
    %v320 = vmul.u32.u64.compose %v319, %v318
    %v321 = vextract.low.u32 %v320
    %v322 = vextract.high.u32 %v320
    %v323 = vmul.u32.u64.compose %v319, %v314
    %v324 = vextract.low.u32 %v323
    %v325 = vextract.high.u32 %v323
    %v326 = vmul.u32 %v319, %v310
    %v327 = vadd.s32 %v322, %v324
    %vm328 = vc.u32 %v322, %v324
    %v329 = vadd.s32 %v325, 1
    %v330 = vsel %vm328, %v329, %v325
    %v331 = vadd.s32 %v326, %v330
    %v332 = vadd.s32 %v331, 536870912
    %v333 = vshrl.u32 %v332, 30
    %v334 = vshll.u32 %v333, 30
    %v335 = vsub.s32 %v331, %v334
    %vm336 = vcmp.lt.s32.totalorder %v335, 0
    %v337 = vsub.s32 0, %v335
    %v338 = vsel %vm336, %v337, %v335
    %v339 = vclz %v338
    %v340 = vsub.s32 %v339, 2
    %vm341 = vcmp.gt.s32.totalorder 0, %v340
    %v342 = vsel %vm341, 0, %v340
    %v343 = vsub.s32 32, %v342
    %v344 = vshll.u32 %v335, %v342
    %v345 = vshrl.u32 %v327, %v343
    %v346 = vor.u32 %v344, %v345
    %v347 = vsub.s32 4294967266, %v342
    %v348 = vadd.s32 %v347, 127
    %v349 = vshll.u32 %v348, 23
    %v350 = vor.u32 4788187, %v349
    %v351 = vand.u32 2147483647, %v350
    %v353 = vcvt.s32.f32 %v346
    %v354 = vmul.f32 %v353, %v351
    %v355 = vxor.u32 %v354, 2147483648
    %v356 = vsel %vm273, %v355, %v354
    %v357 = vsub.s32 4, %v333
    %v358 = vsel %vm273, %v357, %v333
    %v359 = vsel %vm272, %v166, %v356
    %v360 = vsel %vm272, 0, %v358
    %v361 = vcosq.f32.pop %v359
    %v362 = vsinq.f32.pop %v359
    %vm363 = vweird.f32 %v166
    %v364 = vadd.s32 %v360, 3
    %v365 = vand.u32 %v364, 3
    %vm366 = vcmp.lt.s32.totalorder %v365, 2
    %vm367 = vcmp.eq.s32.totalorder %v365, 0
    %v368 = vxor.u32 %v362, 2147483648
    %v369 = vsel %vm367, %v361, %v368
    %vm370 = vcmp.eq.s32.totalorder %v365, 2
    %v371 = vxor.u32 %v361, 2147483648
    %v372 = vsel %vm370, %v371, %v362
    %v373 = vsel %vm366, %v369, %v372
    %v374 = vsel %vm363, nan, %v373
    %375 = vst [vmem:[#allocation7] sm:$0xff] %v270
    %376 = vst [vmem:[#allocation7 + $0x18] sm:$0xff] %v374
    %v377 = vld [vmem:[%s3] sm:$0x1]
    %v379 = vlaneseq
    %v380 = vshrl.u32 %v379, 7
    %v381 = vsub.s32 0, %v380
    %v382 = vrot.slane %v377, %v381
    %v384 = vadd.f32 %v129, %v382
    %v385 = vadd.f32 %v135, %v382
    %v386 = vand.u32 2147483647, %v384
    %vm387 = vcmp.le.f32.partialorder %v386, 0.7853982
    %vm388 = vcmp.lt.s32.totalorder %v384, 0
    %v389 = vand.u32 %v384, 2139095040
    %v390 = vshrl.u32 %v389, 23
    %v391 = vsub.s32 %v390, 127
    %v392 = vand.u32 2147483647, %v384
    %v393 = vand.u32 %v392, 8388607
    %v394 = vor.u32 %v393, 8388608
    %v395 = vsub.s32 0, %v394
    %v396 = vadd.s32 %v391, 1
    %vm397 = vcmp.gt.s32.totalorder %v396, 0
    %v398 = vsel %vm397, %v396, 0
    %v399 = vshrl.u32 %v398, 5
    %v400 = vand.u32 %v398, 31
    %v401 = vsub.s32 32, %v400
    %v402 = vshrl.u32 683565275, %v401
    %v403 = vshll.u32 683565275, %v400
    %v404 = vshrl.u32 2475754826, %v401
    %v405 = vor.u32 %v403, %v404
    %v406 = vshll.u32 2475754826, %v400
    %v407 = vshrl.u32 2131351028, %v401
    %v408 = vor.u32 %v406, %v407
    %v409 = vshll.u32 2131351028, %v400
    %v410 = vshrl.u32 2102212464, %v401
    %v411 = vor.u32 %v409, %v410
    %v412 = vshll.u32 2102212464, %v400
    %v413 = vshrl.u32 920167782, %v401
    %v414 = vor.u32 %v412, %v413
    %v415 = vshll.u32 920167782, %v400
    %v416 = vshrl.u32 1326507024, %v401
    %v417 = vor.u32 %v415, %v416
    %vm418 = vcmp.lt.s32.totalorder %v399, 1
    %vm419 = vcmp.lt.s32.totalorder %v399, 2
    %vm420 = vcmp.lt.s32.totalorder %v399, 3
    %vm421 = vcmp.lt.s32.totalorder %v399, 4
    %v422 = vsel %vm418, %v402, %v405
    %v423 = vsel %vm421, %v411, 2102212464
    %v424 = vsel %vm420, %v408, %v423
    %v425 = vsel %vm419, %v422, %v424
    %v426 = vsel %vm418, %v405, %v408
    %v427 = vsel %vm421, %v414, 920167782
    %v428 = vsel %vm420, %v411, %v427
    %v429 = vsel %vm419, %v426, %v428
    %v430 = vsel %vm418, %v408, %v411
    %v431 = vsel %vm421, %v417, 1326507024
    %v432 = vsel %vm420, %v414, %v431
    %v433 = vsel %vm419, %v430, %v432
    %v434 = vshll.u32 %v394, 8
    %v435 = vmul.u32.u64.compose %v434, %v433
    %v436 = vextract.low.u32 %v435
    %v437 = vextract.high.u32 %v435
    %v438 = vmul.u32.u64.compose %v434, %v429
    %v439 = vextract.low.u32 %v438
    %v440 = vextract.high.u32 %v438
    %v441 = vmul.u32 %v434, %v425
    %v442 = vadd.s32 %v437, %v439
    %vm443 = vc.u32 %v437, %v439
    %v444 = vadd.s32 %v440, 1
    %v445 = vsel %vm443, %v444, %v440
    %v446 = vadd.s32 %v441, %v445
    %v447 = vadd.s32 %v446, 536870912
    %v448 = vshrl.u32 %v447, 30
    %v449 = vshll.u32 %v448, 30
    %v450 = vsub.s32 %v446, %v449
    %vm451 = vcmp.lt.s32.totalorder %v450, 0
    %v452 = vsub.s32 0, %v450
    %v453 = vsel %vm451, %v452, %v450
    %v454 = vclz %v453
    %v455 = vsub.s32 %v454, 2
    %vm456 = vcmp.gt.s32.totalorder 0, %v455
    %v457 = vsel %vm456, 0, %v455
    %v458 = vsub.s32 32, %v457
    %v459 = vshll.u32 %v450, %v457
    %v460 = vshrl.u32 %v442, %v458
    %v461 = vor.u32 %v459, %v460
    %v462 = vsub.s32 4294967266, %v457
    %v463 = vadd.s32 %v462, 127
    %v464 = vshll.u32 %v463, 23
    %v465 = vor.u32 4788187, %v464
    %v466 = vand.u32 2147483647, %v465
    %v468 = vcvt.s32.f32 %v461
    %v469 = vmul.f32 %v468, %v466
    %v470 = vxor.u32 %v469, 2147483648
    %v471 = vsel %vm388, %v470, %v469
    %v472 = vsub.s32 4, %v448
    %v473 = vsel %vm388, %v472, %v448
    %v474 = vsel %vm387, %v384, %v471
    %v475 = vsel %vm387, 0, %v473
    %v476 = vcosq.f32.pop %v474
    %v477 = vsinq.f32.pop %v474
    %vm478 = vweird.f32 %v384
    %v479 = vand.u32 %v475, 3
    %vm480 = vcmp.lt.s32.totalorder %v479, 2
    %vm481 = vcmp.eq.s32.totalorder %v479, 0
    %v482 = vxor.u32 %v477, 2147483648
    %v483 = vsel %vm481, %v476, %v482
    %vm484 = vcmp.eq.s32.totalorder %v479, 2
    %v485 = vxor.u32 %v476, 2147483648
    %v486 = vsel %vm484, %v485, %v477
    %v487 = vsel %vm480, %v483, %v486
    %v488 = vsel %vm478, nan, %v487
    %v489 = vand.u32 2147483647, %v385
    %vm490 = vcmp.le.f32.partialorder %v489, 0.7853982
    %vm491 = vcmp.lt.s32.totalorder %v385, 0
    %v492 = vand.u32 %v385, 2139095040
    %v493 = vshrl.u32 %v492, 23
    %v494 = vsub.s32 %v493, 127
    %v495 = vand.u32 2147483647, %v385
    %v496 = vand.u32 %v495, 8388607
    %v497 = vor.u32 %v496, 8388608
    %v498 = vsub.s32 0, %v497
    %v499 = vadd.s32 %v494, 1
    %vm500 = vcmp.gt.s32.totalorder %v499, 0
    %v501 = vsel %vm500, %v499, 0
    %v502 = vshrl.u32 %v501, 5
    %v503 = vand.u32 %v501, 31
    %v504 = vsub.s32 32, %v503
    %v505 = vshrl.u32 683565275, %v504
    %v506 = vshll.u32 683565275, %v503
    %v507 = vshrl.u32 2475754826, %v504
    %v508 = vor.u32 %v506, %v507
    %v509 = vshll.u32 2475754826, %v503
    %v510 = vshrl.u32 2131351028, %v504
    %v511 = vor.u32 %v509, %v510
    %v512 = vshll.u32 2131351028, %v503
    %v513 = vshrl.u32 2102212464, %v504
    %v514 = vor.u32 %v512, %v513
    %v515 = vshll.u32 2102212464, %v503
    %v516 = vshrl.u32 920167782, %v504
    %v517 = vor.u32 %v515, %v516
    %v518 = vshll.u32 920167782, %v503
    %v519 = vshrl.u32 1326507024, %v504
    %v520 = vor.u32 %v518, %v519
    %vm521 = vcmp.lt.s32.totalorder %v502, 1
    %vm522 = vcmp.lt.s32.totalorder %v502, 2
    %vm523 = vcmp.lt.s32.totalorder %v502, 3
    %vm524 = vcmp.lt.s32.totalorder %v502, 4
    %v525 = vsel %vm521, %v505, %v508
    %v526 = vsel %vm524, %v514, 2102212464
    %v527 = vsel %vm523, %v511, %v526
    %v528 = vsel %vm522, %v525, %v527
    %v529 = vsel %vm521, %v508, %v511
    %v530 = vsel %vm524, %v517, 920167782
    %v531 = vsel %vm523, %v514, %v530
    %v532 = vsel %vm522, %v529, %v531
    %v533 = vsel %vm521, %v511, %v514
    %v534 = vsel %vm524, %v520, 1326507024
    %v535 = vsel %vm523, %v517, %v534
    %v536 = vsel %vm522, %v533, %v535
    %v537 = vshll.u32 %v497, 8
    %v538 = vmul.u32.u64.compose %v537, %v536
    %v539 = vextract.low.u32 %v538
    %v540 = vextract.high.u32 %v538
    %v541 = vmul.u32.u64.compose %v537, %v532
    %v542 = vextract.low.u32 %v541
    %v543 = vextract.high.u32 %v541
    %v544 = vmul.u32 %v537, %v528
    %v545 = vadd.s32 %v540, %v542
    %vm546 = vc.u32 %v540, %v542
    %v547 = vadd.s32 %v543, 1
    %v548 = vsel %vm546, %v547, %v543
    %v549 = vadd.s32 %v544, %v548
    %v550 = vadd.s32 %v549, 536870912
    %v551 = vshrl.u32 %v550, 30
    %v552 = vshll.u32 %v551, 30
    %v553 = vsub.s32 %v549, %v552
    %vm554 = vcmp.lt.s32.totalorder %v553, 0
    %v555 = vsub.s32 0, %v553
    %v556 = vsel %vm554, %v555, %v553
    %v557 = vclz %v556
    %v558 = vsub.s32 %v557, 2
    %vm559 = vcmp.gt.s32.totalorder 0, %v558
    %v560 = vsel %vm559, 0, %v558
    %v561 = vsub.s32 32, %v560
    %v562 = vshll.u32 %v553, %v560
    %v563 = vshrl.u32 %v545, %v561
    %v564 = vor.u32 %v562, %v563
    %v565 = vsub.s32 4294967266, %v560
    %v566 = vadd.s32 %v565, 127
    %v567 = vshll.u32 %v566, 23
    %v568 = vor.u32 4788187, %v567
    %v569 = vand.u32 2147483647, %v568
    %v571 = vcvt.s32.f32 %v564
    %v572 = vmul.f32 %v571, %v569
    %v573 = vxor.u32 %v572, 2147483648
    %v574 = vsel %vm491, %v573, %v572
    %v575 = vsub.s32 4, %v551
    %v576 = vsel %vm491, %v575, %v551
    %v577 = vsel %vm490, %v385, %v574
    %v578 = vsel %vm490, 0, %v576
    %v579 = vcosq.f32.pop %v577
    %v580 = vsinq.f32.pop %v577
    %vm581 = vweird.f32 %v385
    %v582 = vand.u32 %v578, 3
    %vm583 = vcmp.lt.s32.totalorder %v582, 2
    %vm584 = vcmp.eq.s32.totalorder %v582, 0
    %v585 = vxor.u32 %v580, 2147483648
    %v586 = vsel %vm584, %v579, %v585
    %vm587 = vcmp.eq.s32.totalorder %v582, 2
    %v588 = vxor.u32 %v579, 2147483648
    %v589 = vsel %vm587, %v588, %v580
    %v590 = vsel %vm583, %v586, %v589
    %v591 = vsel %vm581, nan, %v590
    %592 = vst [vmem:[#allocation7 + $0x8] sm:$0xff] %v488
    %593 = vst [vmem:[#allocation7 + $0x20] sm:$0xff] %v591
    %594 = vst [vmem:[#allocation7 + $0x10] sm:$0xff] %v156
    %595 = vst [vmem:[#allocation7 + $0x28] sm:$0xff] %v157
    // Predicated region
    $region30: #{tpu_custom_call.1} parent=1 // pred_check
      _
    $region31: #{tpu_custom_call.1} parent=1 // pred_check_branch
      %597 = sbr.rel (0) target = $region33
    $region32: #{tpu_custom_call.1} parent=1 // pred_region
      %s599 = ssub.s32 768, 768
      %600 = vsyncadd [#allocation4], %s599
      %s601 = sshll.u32 [#allocation7], 4
      %s602 = int_to_ptr.vmem [resolvable:$true] %s601
      %607 = dma.vmem_to_hbm [thread:$0]  %s602, 768, %s5, [#allocation4], 384, 384, 24
    $region33: #{tpu_custom_call.1} parent=1 // pred_fallthru
      _
    // Predicated region
    $region34: #{tpu_custom_call.1} parent=1 // pred_check
      _
    $region35: #{tpu_custom_call.1} parent=1 // pred_check_branch
      %609 = sbr.rel (0) target = $region37
    $region36: #{tpu_custom_call.1} parent=1 // pred_region
      %610 = dma.done [#allocation4], 768
    $region37: #{tpu_custom_call.1} parent=1 // pred_fallthru
      _
    %611 = vsyncpa [#allocation3], 1
    %612 = vsyncpa [#allocation6], 1
    %613 = vsyncpa [#allocation4], 1

</llo_original>
